<compile_context>
chip_gen: v6e
topology: v6e:2x2x1
jax: 0.10.0
libtpu: 0.0.40
codegen_flags: <defaults>
</compile_context>

<pallas_src>
import re

import jax
import jax.numpy as jnp
from jax.experimental import pallas as pl
from jax.experimental.pallas import tpu as pltpu

_LANE = 128
_SUBLANE = 8
_CHUNK_ROWS = 128              # preferred rows per in-kernel streaming chunk
_MIB = 1024 * 1024


def _round_up(x, m):
    return ((x + m - 1) // m) * m


def _cdiv(a, b):
    return -(-a // b)


def _device_kind():
    try:
        return jax.devices()[0].device_kind or ""
    except Exception:
        return ""


def _chip_generation(kind):
    m = re.search(r"(\d+)", kind)
    return int(m.group(1)) if m else None


def _default_splits(kind):
    """2-way core split only on chips with >1 TensorCore per JAX device."""
    k = kind.lower()
    if not k:
        return 2
    if "lite" in k or "v5e" in k or "v6e" in k:
        return 1                      # v5e / v6e: single TensorCore per device
    return 2                          # v4/v5p megacore, v7x (2 TCs), unknown/future


def _block_policy(gen):
    """(bytes per input block, scoped-VMEM limit), chip aware."""
    if gen is not None and gen >= 7:
        return 4 * _MIB, 32 * _MIB    # v7x: only 64 MiB physical VMEM per TC
    if gen in (5, 6):
        return 8 * _MIB, 64 * _MIB    # v5e / v6e: 128 MiB physical VMEM
    return 4 * _MIB, 32 * _MIB        # unknown / older: conservative


def _pick_chunk(tm):
    """Largest chunk size (<=128 rows) that divides tm; tm is a multiple of 8."""
    for c in (_CHUNK_ROWS, 64, 32, 16, 8):
        if tm % c == 0:
            return c
    return _SUBLANE


def _make_kernel(M, tm, bpc, needs_mask, chunk):
    """Reduction kernel over a (M, 128) layout tiled in (tm, 128) blocks."""
    assert tm % chunk == 0 and chunk % _SUBLANE == 0
    n_chunks = tm // chunk
    unroll = max(1, min(8, n_chunks))

    def kernel(pred_ref, target_ref, out_ref):
        c = pl.program_id(0)          # core-split axis ("parallel")
        i = pl.program_id(1)          # reduction axis ("arbitrary")

        @pl.when(i == 0)
        def _init():
            out_ref[...] = jnp.zeros_like(out_ref)

        lb = c * bpc + i              # logical block index (>= nblocks for phantoms)
        row0 = lb * tm                # first logical row of this block

        def chunk_sum(base, masked):
            p = pred_ref[pl.ds(base, chunk), :]
            t = target_ref[pl.ds(base, chunk), :]
            if p.dtype != jnp.float32:
                p = p.astype(jnp.float32)
            if t.dtype != jnp.float32:
                t = t.astype(jnp.float32)
            d = p - t
            sq = d * d
            if masked:
                # Select (not multiply) so garbage in padded/phantom rows stays inert.
                rows = row0 + base + jax.lax.broadcasted_iota(
                    jnp.int32, (chunk, _LANE), 0)
                sq = jnp.where(rows < M, sq, 0.0)
            # Fold the chunk into a vreg-resident (8, 128) partial sum (VPU adds only).
            return sq.reshape(chunk // _SUBLANE, _SUBLANE, _LANE).sum(axis=0)

        def block_sum(masked):
            def body(s, acc):
                base = pl.multiple_of(s * chunk, chunk)
                return acc + chunk_sum(base, masked)
            return jax.lax.fori_loop(
                0, n_chunks, body,
                jnp.zeros((_SUBLANE, _LANE), jnp.float32), unroll=unroll)

        if needs_mask:
            # Only boundary / phantom blocks pay the iota + compare + select cost.
            is_full = (row0 + tm) <= M

            @pl.when(is_full)
            def _interior():
                out_ref[...] += block_sum(False)

            @pl.when(jnp.logical_not(is_full))
            def _boundary():
                out_ref[...] += block_sum(True)
        else:
            out_ref[...] += block_sum(False)

    return kernel


def custom_square_loss(pred: jax.Array, target: jax.Array,
                       *, block_rows=None, splits=None) -> jax.Array:
    """Pallas TPU implementation of torch.sum(torch.square(pred - target))."""
    assert pred.shape == target.shape, "pred and target must have the same shape"
    out_dtype = jnp.result_type(pred.dtype, target.dtype)

    total = pred.size
    if total == 0:
        return jnp.zeros((), out_dtype)

    p = jnp.reshape(pred, (-1,))
    t = jnp.reshape(target, (-1,))

    # <128-element tail handled with plain jnp (tiny); kernel sees the aligned prefix.
    rem = total % _LANE
    tail = None
    if rem:
        pt = p[total - rem:].astype(jnp.float32)
        tt = t[total - rem:].astype(jnp.float32)
        tail = jnp.sum(jnp.square(pt - tt))
        p = p[:total - rem]
        t = t[:total - rem]

    aligned = total - rem
    if aligned == 0:
        return tail.astype(out_dtype)

    M = aligned // _LANE
    p2 = p.reshape(M, _LANE)
    t2 = t.reshape(M, _LANE)

    # ---- chip-aware configuration -------------------------------------------------
    kind = _device_kind()
    gen = _chip_generation(kind)
    block_bytes, vmem_limit = _block_policy(gen)
    req_splits = splits if splits is not None else _default_splits(kind)

    itemsize = max(jnp.dtype(p2.dtype).itemsize, jnp.dtype(t2.dtype).itemsize)
    m_rounded = _round_up(M, _SUBLANE)

    if block_rows is not None:
        tm = min(max(_SUBLANE, _round_up(block_rows, _SUBLANE)), m_rounded)
    else:
        tm_target = max(
            _CHUNK_ROWS,
            (block_bytes // (_LANE * itemsize)) // _CHUNK_ROWS * _CHUNK_ROWS,
        )
        if m_rounded >= tm_target:
            tm = tm_target                                    # multiple of 128 rows
        elif m_rounded >= _CHUNK_ROWS:
            tm = (m_rounded // _CHUNK_ROWS) * _CHUNK_ROWS     # keep 128-row chunks
        else:
            tm = m_rounded                                    # tiny input

    nblocks = _cdiv(M, tm)
    n_splits = max(1, min(req_splits, nblocks))

    # Best-effort: make the block count divide evenly across core splits so no
    # redundant phantom-block DMA is issued.
    if n_splits > 1 and nblocks % n_splits != 0:
        target_blocks = _round_up(nblocks, n_splits)
        tm_try = _round_up(_cdiv(M, target_blocks), _CHUNK_ROWS)
        if _CHUNK_ROWS <= tm_try <= m_rounded and _cdiv(M, tm_try) % n_splits == 0:
            tm = tm_try
            nblocks = _cdiv(M, tm)

    bpc = _cdiv(nblocks, n_splits)                 # blocks per core-split
    needs_mask = (n_splits * bpc * tm) != M
    chunk = _pick_chunk(tm)

    def in_map(c, i):
        # Clamp so DMA windows stay in bounds; phantom (duplicate) blocks are
        # fully zeroed by the in-kernel row mask.
        return (jnp.minimum(c * bpc + i, nblocks - 1), 0)

    def out_map(c, i):
        return (c, 0)

    kernel = _make_kernel(M, tm, bpc, needs_mask, chunk)

    partials = pl.pallas_call(
        kernel,
        out_shape=jax.ShapeDtypeStruct((n_splits * _SUBLANE, _LANE), jnp.float32),
        grid_spec=pltpu.PrefetchScalarGridSpec(
            num_scalar_prefetch=0,
            grid=(n_splits, bpc),
            in_specs=[
                pl.BlockSpec((tm, _LANE), in_map),
                pl.BlockSpec((tm, _LANE), in_map),
            ],
            out_specs=pl.BlockSpec((_SUBLANE, _LANE), out_map),
        ),
        compiler_params=pltpu.CompilerParams(
            dimension_semantics=("parallel", "arbitrary"),
            vmem_limit_bytes=vmem_limit,
        ),
    )(p2, t2)

    result = jnp.sum(partials)
    if tail is not None:
        result = result + tail
    return result.astype(out_dtype)


if __name__ == "__main__":
    key = jax.random.PRNGKey(0)
    ks = jax.random.split(key, 10)

    def ref_loss(a, b):
        return jnp.sum(jnp.square(a.astype(jnp.float32) - b.astype(jnp.float32)))

    # 1) Primary shape implied by the module's forward.
    shape = (2, 4, 16, 16)
    pred = jax.random.normal(ks[0], shape, dtype=jnp.float32)
    target = jax.random.normal(ks[1], shape, dtype=jnp.float32)
    loss = custom_square_loss(pred, target)
    jax.block_until_ready(loss)
    ref = ref_loss(pred, target)
    assert jnp.allclose(loss, ref, rtol=1e-5, atol=1e-5), (loss, ref)

    # 2) Tiny non-multiple-of-128 size: pure-jnp tail path.
    a = jax.random.normal(ks[2], (3, 5, 7), dtype=jnp.float32)
    b = jax.random.normal(ks[3], (3, 5, 7), dtype=jnp.float32)
    l2 = custom_square_loss(a, b)
    jax.block_until_ready(l2)
    r2 = ref_loss(a, b)
    assert jnp.allclose(l2, r2, rtol=1e-5, atol=1e-5), (l2, r2)

    # 3) Misaligned size large enough to hit the kernel: masked edge block + jnp tail.
    a = jax.random.normal(ks[4], (5, 300), dtype=jnp.float32)
    b = jax.random.normal(ks[5], (5, 300), dtype=jnp.float32)
    l3 = custom_square_loss(a, b)
    jax.block_until_ready(l3)
    r3 = ref_loss(a, b)
    assert jnp.allclose(l3, r3, rtol=1e-5, atol=1e-5), (l3, r3)

    # 4) Multi-chunk streaming fori_loop path (512 rows -> 4 chunks of 128).
    a = jax.random.normal(ks[6], (64, 1024), dtype=jnp.float32)
    b = jax.random.normal(ks[7], (64, 1024), dtype=jnp.float32)
    l4 = custom_square_loss(a, b)
    jax.block_until_ready(l4)
    r4 = ref_loss(a, b)
    assert jnp.allclose(l4, r4, rtol=1e-4, atol=1e-3), (l4, r4)

    # 5) Forced multi-block + core-split + phantom/masked block path.
    a = jax.random.normal(ks[8], (40, 128), dtype=jnp.float32)
    b = jax.random.normal(ks[9], (40, 128), dtype=jnp.float32)
    l5 = custom_square_loss(a, b, block_rows=16, splits=2)
    jax.block_until_ready(l5)
    r5 = ref_loss(a, b)
    assert jnp.allclose(l5, r5, rtol=1e-5, atol=1e-4), (l5, r5)

    print("KERNEL_OK")
</pallas_src>

<mosaic_0001>
module attributes {stable_mosaic.version = 11 : i64} {
  func.func @kernel(%arg0: i32, %arg1: i32, %arg2: memref<16x128xf32, #tpu.memory_space<vmem>>, %arg3: memref<16x128xf32, #tpu.memory_space<vmem>>, %arg4: memref<8x128xf32, #tpu.memory_space<vmem>>) attributes {dimension_semantics = [#tpu.dimension_semantics<parallel>, #tpu.dimension_semantics<arbitrary>], iteration_bounds = array<i64: 1, 1>, scalar_prefetch = 0 : i64, scratch_operands = 0 : i64, tpu.core_type = #tpu.core_type<tc>, window_params = [{transform_indices = @transform_0, window_bounds = array<i64: 16, 128>}, {transform_indices = @transform_1, window_bounds = array<i64: 16, 128>}, {transform_indices = @transform_2, window_bounds = array<i64: 8, 128>}]} {
    %c0_i32 = arith.constant 0 : i32
    %0 = arith.cmpi eq, %arg1, %c0_i32 : i32
    %1 = arith.extui %0 : i1 to i32
    %c0_i32_0 = arith.constant 0 : i32
    %2 = arith.cmpi ne, %1, %c0_i32_0 : i32
    scf.if %2 {
      %cst_8 = arith.constant 0.000000e+00 : f32
      %18 = vector.broadcast %cst_8 : f32 to vector<8x128xf32>
      %c0_9 = arith.constant 0 : index
      %c0_10 = arith.constant 0 : index
      %19 = vector.load %arg4[%c0_9, %c0_10] : memref<8x128xf32, #tpu.memory_space<vmem>>, vector<8x128xf32>
      tpu.vector_store %arg4[%c0_9, %c0_10], %18 {strides = array<i32>} : memref<8x128xf32, #tpu.memory_space<vmem>>, vector<8x128xf32>,
    } else {
    }
    %c0 = arith.constant 0 : index
    %c0_1 = arith.constant 0 : index
    %3 = vector.load %arg4[%c0, %c0_1] : memref<8x128xf32, #tpu.memory_space<vmem>>, vector<8x128xf32>
    %cst = arith.constant 0.000000e+00 : f32
    %4 = vector.broadcast %cst : f32 to vector<8x128xf32>
    %c0_i32_2 = arith.constant 0 : i32
    %c16_i32 = arith.constant 16 : i32
    %5 = arith.muli %c0_i32_2, %c16_i32 : i32
    %6 = tpu.assume_multiple %5, 16 : i32
    %7 = arith.index_cast %6 : i32 to index
    %c0_3 = arith.constant 0 : index
    %8 = vector.load %arg2[%7, %c0_3] : memref<16x128xf32, #tpu.memory_space<vmem>>, vector<16x128xf32>
    %9 = arith.index_cast %6 : i32 to index
    %c0_4 = arith.constant 0 : index
    %10 = vector.load %arg3[%9, %c0_4] : memref<16x128xf32, #tpu.memory_space<vmem>>, vector<16x128xf32>
    %11 = arith.subf %8, %10 : vector<16x128xf32>
    %12 = arith.mulf %11, %11 : vector<16x128xf32>
    %13 = vector.shape_cast %12 : vector<16x128xf32> to vector<2x8x128xf32>
    %cst_5 = arith.constant dense<0.000000e+00> : vector<8x128xf32>
    %14 = vector.multi_reduction <add>, %13, %cst_5 [0] : vector<2x8x128xf32> to vector<8x128xf32>
    %15 = arith.addf %4, %14 : vector<8x128xf32>
    %c1_i32 = arith.constant 1 : i32
    %16 = arith.addf %3, %15 : vector<8x128xf32>
    %c0_6 = arith.constant 0 : index
    %c0_7 = arith.constant 0 : index
    %17 = vector.load %arg4[%c0_6, %c0_7] : memref<8x128xf32, #tpu.memory_space<vmem>>, vector<8x128xf32>
    tpu.vector_store %arg4[%c0_6, %c0_7], %16 {strides = array<i32>} : memref<8x128xf32, #tpu.memory_space<vmem>>, vector<8x128xf32>,
    return
  }
  func.func @transform_0(%arg0: i32, %arg1: i32) -> (i32, i32) {
    %c1_i32 = arith.constant 1 : i32
    %0 = arith.muli %arg0, %c1_i32 : i32
    %1 = arith.addi %0, %arg1 : i32
    %c0_i32 = arith.constant 0 : i32
    %2 = arith.minsi %1, %c0_i32 : i32
    %c0_i32_0 = arith.constant 0 : i32
    %c0_i32_1 = arith.constant 0 : i32
    return %2, %c0_i32_0 : i32, i32
  }
  func.func @transform_1(%arg0: i32, %arg1: i32) -> (i32, i32) {
    %c1_i32 = arith.constant 1 : i32
    %0 = arith.muli %arg0, %c1_i32 : i32
    %1 = arith.addi %0, %arg1 : i32
    %c0_i32 = arith.constant 0 : i32
    %2 = arith.minsi %1, %c0_i32 : i32
    %c0_i32_0 = arith.constant 0 : i32
    %c0_i32_1 = arith.constant 0 : i32
    return %2, %c0_i32_0 : i32, i32
  }
  func.func @transform_2(%arg0: i32, %arg1: i32) -> (i32, i32) {
    %c0_i32 = arith.constant 0 : i32
    %c0_i32_0 = arith.constant 0 : i32
    return %arg0, %c0_i32 : i32, i32
  }
}

</mosaic_0001>

<llo_original>
// kernel: tpu_custom_call.1
$region0: #{tpu_custom_call.1}
  #allocation0 [shape = 'u32[]', space=smem, size = 0x4, offset = 0x4, fixed_abs, tag = 'smem constant byte address 0x4 - core index']
  #allocation1 [shape = 'u32[144,128]{1,0:T(1,128)}', space=vmem, size = 0x12000, scoped, tag = 'internal scratch']
  %s0 = inlined_call_operand.hbm [shape: f32[16,128], index: 0, kind: input, shape index: {}]
  %s1 = inlined_call_operand.hbm [shape: f32[16,128], index: 1, kind: input, shape index: {}]
  %s2 = inlined_call_operand.hbm [shape: f32[8,128], index: 2, kind: output, shape index: {}]
  %s3 = sld [smem:[#allocation0]]
  $region30: #{tpu_custom_call.1} parent=0
    _
  %s5 = ssub.s32 1, %s3
  %s6 = scalar_select 0, %s5, %s3
  $region1: #{tpu_custom_call.1} parent=0
    #allocation2 [shape = 'u8[8192]{0}', space=vmem, size = 0x2000, scoped, tag = 'input window, operand 0, single buffered']
    #allocation3 [shape = 's32[1]{0}', space=sflag, size = 0x4, scoped, tag = 'scoped memory for tpu_custom_call.1']
    #allocation4 [shape = 's32[1]{0}', space=sflag, size = 0x4, scoped, tag = 'scoped memory for tpu_custom_call.1']
    #allocation5 [shape = 'u8[8192]{0}', space=vmem, size = 0x2000, scoped, tag = 'input window, operand 1, single buffered']
    #allocation6 [shape = 's32[1]{0}', space=sflag, size = 0x4, scoped, tag = 'scoped memory for tpu_custom_call.1']
    #allocation7 [shape = 'u8[4096]{0}', space=vmem, size = 0x1000, scoped, tag = 'output window, operand 0, single buffered']
    %7 = vsyncpa [#allocation3], 0
    %8 = vsyncpa [#allocation6], 0
    %9 = vsyncpa [#allocation4], 0
    // Predicated region
    $region2: #{tpu_custom_call.1} parent=1 // pred_check
      _
    $region3: #{tpu_custom_call.1} parent=1 // pred_check_branch
      %11 = sbr.rel (0) target = $region5
    $region4: #{tpu_custom_call.1} parent=1 // pred_region
      %s12 = sadd.s32 0, 0
      %p13 = scmp.lt.s32.totalorder %s12, 0
      %s14 = scalar_select %p13, %s12, 0
      %s15 = smul.u32 2, %s14
      %s17 = ssub.s32 256, 256
      %18 = vsyncadd [#allocation3], %s17
      %s19 = smul.addr %s15, 128
      %s20 = scalar_lea.hbm %s0, %s19
      %s21 = sshll.u32 [#allocation2], 4
      %s22 = int_to_ptr.vmem [resolvable:$true] %s21
      %27 = dma.hbm_to_vmem [thread:$0]  %s20, 256, %s22, [#allocation3], 128, 128, 8
    $region5: #{tpu_custom_call.1} parent=1 // pred_fallthru
      _
    // Predicated region
    $region6: #{tpu_custom_call.1} parent=1 // pred_check
      _
    $region7: #{tpu_custom_call.1} parent=1 // pred_check_branch
      %29 = sbr.rel (0) target = $region9
    $region8: #{tpu_custom_call.1} parent=1 // pred_region
      %s30 = sadd.s32 0, 0
      %p31 = scmp.lt.s32.totalorder %s30, 0
      %s32 = scalar_select %p31, %s30, 0
      %s33 = smul.u32 2, %s32
      %s35 = ssub.s32 256, 256
      %36 = vsyncadd [#allocation6], %s35
      %s37 = smul.addr %s33, 128
      %s38 = scalar_lea.hbm %s1, %s37
      %s39 = sshll.u32 [#allocation5], 4
      %s40 = int_to_ptr.vmem [resolvable:$true] %s39
      %45 = dma.hbm_to_vmem [thread:$0]  %s38, 256, %s40, [#allocation6], 128, 128, 8
    $region9: #{tpu_custom_call.1} parent=1 // pred_fallthru
      _
    // Predicated region
    $region10: #{tpu_custom_call.1} parent=1 // pred_check
      _
    $region11: #{tpu_custom_call.1} parent=1 // pred_check_branch
      %47 = sbr.rel (0) target = $region13
    $region12: #{tpu_custom_call.1} parent=1 // pred_region
      %48 = dma.done [#allocation3], 256
    $region13: #{tpu_custom_call.1} parent=1 // pred_fallthru
      _
    // Predicated region
    $region14: #{tpu_custom_call.1} parent=1 // pred_check
      _
    $region15: #{tpu_custom_call.1} parent=1 // pred_check_branch
      %50 = sbr.rel (0) target = $region17
    $region16: #{tpu_custom_call.1} parent=1 // pred_region
      %51 = dma.done [#allocation6], 256
    $region17: #{tpu_custom_call.1} parent=1 // pred_fallthru
      _
    %s52 = sadd.s32 0, 0
    %p53 = scmp.lt.s32.totalorder %s52, 0
    %s54 = scalar_select %p53, %s52, 0
    %s55 = smul.u32 2, %s54
    %s56 = sadd.s32 0, 0
    %p57 = scmp.lt.s32.totalorder %s56, 0
    %s58 = scalar_select %p57, %s56, 0
    %s59 = smul.u32 2, %s58
    %p60 = scmp.eq.s32.totalorder 0, 0
    // Predicated region
    $region18: #{tpu_custom_call.1} parent=1 // pred_check
      %p61 = pneg %p60
    $region19: #{tpu_custom_call.1} parent=1 // pred_check_branch
      %63 = sbr.rel (%p61) target = $region21
    $region20: #{tpu_custom_call.1} parent=1 // pred_region
      %64 = vst [vmem:[#allocation7] sm:$0xff] 0.0
    $region21: #{tpu_custom_call.1} parent=1 // pred_fallthru
      _
    %v65 = vld [vmem:[#allocation7] sm:$0xff]
    %v66 = vld [vmem:[#allocation2] sm:$0xff]
    %v67 = vld [vmem:[#allocation2 + $0x8] sm:$0xff]
    %v68 = vld [vmem:[#allocation5] sm:$0xff]
    %v69 = vld [vmem:[#allocation5 + $0x8] sm:$0xff]
    %v70 = vsub.f32 %v66, %v68
    %v71 = vsub.f32 %v67, %v69
    %v72 = vmul.f32 %v70, %v70
    %v73 = vmul.f32 %v71, %v71
    %v74 = vadd.f32 %v72, %v73
    %v75 = vadd.f32 %v74, 0.0
    %v76 = vadd.f32 %v65, %v75
    %77 = vst [vmem:[#allocation7] sm:$0xff] %v76
    // Predicated region
    $region22: #{tpu_custom_call.1} parent=1 // pred_check
      _
    $region23: #{tpu_custom_call.1} parent=1 // pred_check_branch
      %79 = sbr.rel (0) target = $region25
    $region24: #{tpu_custom_call.1} parent=1 // pred_region
      %s81 = ssub.s32 128, 128
      %82 = vsyncadd [#allocation4], %s81
      %s84 = sshll.u32 [#allocation7], 4
      %s85 = int_to_ptr.vmem [resolvable:$true] %s84
      %87 = dma.vmem_to_hbm [thread:$0]  %s85, 128, %s2, [#allocation4]
    $region25: #{tpu_custom_call.1} parent=1 // pred_fallthru
      _
    // Predicated region
    $region26: #{tpu_custom_call.1} parent=1 // pred_check
      _
    $region27: #{tpu_custom_call.1} parent=1 // pred_check_branch
      %89 = sbr.rel (0) target = $region29
    $region28: #{tpu_custom_call.1} parent=1 // pred_region
      %90 = dma.done [#allocation4], 128
    $region29: #{tpu_custom_call.1} parent=1 // pred_fallthru
      _
    %91 = vsyncpa [#allocation3], 1
    %92 = vsyncpa [#allocation6], 1
    %93 = vsyncpa [#allocation4], 1

</llo_original>
